<compile_context>
chip_gen: v7x
topology: tpu7x:2x2x1
jax: 0.10.0
libtpu: 0.0.40
codegen_flags: <defaults>
</compile_context>

<pallas_src>
import math

import jax
import jax.numpy as jnp
from jax.experimental import pallas as pl
from jax.experimental.pallas import tpu as pltpu


def _spatial_attention_kernel(q_ref, k_ref, v_ref, ctx_ref, attn_ref):
    # q_ref:    (TB, H)     queries
    # k_ref:    (TB, S, H)  keys
    # v_ref:    (TB, S, H)  values
    # ctx_ref:  (TB, H)     context        (2-D: dense, unmasked lane stores)
    # attn_ref: (TB, S)     attn weights   (2-D, S on the lane axis)
    q = q_ref[...]
    k = k_ref[...]
    v = v_ref[...]

    h = k.shape[-1]
    scale = 1.0 / math.sqrt(h)

    # Dot-product scores: VPU multiply in the input dtype, f32 lane reduction.
    # (The naive matmul here has N=1, so the MXU would be ~1/256 utilized and
    # only add result-FIFO drain latency.)
    scores = jnp.sum(k * q[:, None, :], axis=-1, dtype=jnp.float32) * scale  # (TB, S)

    # Numerically stable softmax over the spatial axis (nn.Softmax(dim=1)), f32.
    m = jnp.max(scores, axis=-1, keepdims=True)                              # (TB, 1)
    e = jnp.exp(scores - m)                                                  # (TB, S)
    denom = jnp.sum(e, axis=-1, keepdims=True)                               # (TB, 1)
    p = e / denom                                 # exact divide: denom is tiny, accuracy is free

    # TODO(synk): nn.Dropout(0.2) is identity in eval mode; train-mode dropout
    # would use pltpu.prng_seed + pltpu.prng_random_bits here.

    attn_ref[...] = p.astype(attn_ref.dtype)                                 # dense (TB, S) store

    # Weighted sum of values: VPU multiply in the input dtype, f32 sublane
    # reduction over S.
    ctx = jnp.sum(p.astype(v.dtype)[:, :, None] * v, axis=1, dtype=jnp.float32)  # (TB, H)
    ctx_ref[...] = ctx.astype(ctx_ref.dtype)                                 # dense (TB, H) store


def _tpu_vmem_capacity_bytes():
    try:
        return int(pltpu.get_tpu_info().vmem_capacity_bytes)
    except Exception:
        return 64 * 1024 * 1024  # conservative (v7x-sized) fallback


def _choose_batch_tile(bp, s, h, in_itemsize, ctx_itemsize, attn_itemsize, block_budget):
    """Largest multiple-of-8 batch tile that divides bp and whose full working
    set (double-buffered I/O blocks + in-kernel intermediates) fits the budget."""
    # Double-buffered input blocks (q, k, v) + double-buffered output blocks.
    io = 2 * (2 * s * h + h) * in_itemsize + 2 * (h * ctx_itemsize + s * attn_itemsize)
    # In-kernel live intermediates: the k*q and p*v elementwise products plus the
    # f32 scores / softmax / ctx vectors (budgeted at f32 width to be safe on
    # v5e, which upcasts bf16 VALU work to f32).
    interm = 2 * s * h * 4 + 4 * (3 * s + 2 * h)
    per_batch = io + interm

    tb = max(8, (block_budget // max(per_batch, 1)) // 8 * 8)
    tb = min(tb, bp)
    while bp % tb:          # bp is a multiple of 8, so this terminates at tb == 8
        tb -= 8

    # Prefer an even number of grid steps when tiling is needed so both v7x
    # TensorCores stay busy; costs nothing on single-core v5e/v6e.
    steps = bp // tb
    if steps > 1 and steps % 2:
        cand = tb
        while cand >= 8:
            if bp % cand == 0 and (bp // cand) % 2 == 0:
                return cand
            cand -= 8
    return tb


def spatial_attention(queries, keys, values):
    """queries: (B, H) or (B, 1, H); keys/values: (B, S, H).

    Returns (context (B, H), attention weights (B, S))."""
    if queries.ndim == 3:
        queries = queries[:, 0, :]
    B, S, H = keys.shape
    assert queries.shape == (B, H)
    assert values.shape == (B, S, H)

    ctx_dtype = queries.dtype
    attn_dtype = queries.dtype

    # Generation-aware VMEM budgets: v7x has 64 MiB/TC, v5e/v6e have 128 MiB.
    vmem_phys = _tpu_vmem_capacity_bytes()
    if vmem_phys <= 64 * 1024 * 1024:
        block_budget = 14 * 1024 * 1024
        vmem_limit = 48 * 1024 * 1024
    else:
        block_budget = 48 * 1024 * 1024
        vmem_limit = 96 * 1024 * 1024

    # Pad the batch to a multiple of 8 so the 2-D (tb, H)/(tb, S) blocks satisfy
    # the (8, 128) sublane constraint with dense stores for any B, then slice
    # the padding back off.  Padded rows are independent and produce no NaNs.
    Bp = -(-B // 8) * 8
    if Bp != B:
        queries = jnp.pad(queries, ((0, Bp - B), (0, 0)))
        keys = jnp.pad(keys, ((0, Bp - B), (0, 0), (0, 0)))
        values = jnp.pad(values, ((0, Bp - B), (0, 0), (0, 0)))

    tb = _choose_batch_tile(
        Bp, S, H,
        keys.dtype.itemsize,
        jnp.dtype(ctx_dtype).itemsize,
        jnp.dtype(attn_dtype).itemsize,
        block_budget,
    )
    grid = (Bp // tb,)

    grid_spec = pltpu.PrefetchScalarGridSpec(
        num_scalar_prefetch=0,
        grid=grid,
        in_specs=[
            pl.BlockSpec((tb, H), lambda b: (b, 0)),
            pl.BlockSpec((tb, S, H), lambda b: (b, 0, 0)),
            pl.BlockSpec((tb, S, H), lambda b: (b, 0, 0)),
        ],
        out_specs=[
            pl.BlockSpec((tb, H), lambda b: (b, 0)),
            pl.BlockSpec((tb, S), lambda b: (b, 0)),
        ],
    )

    out_shapes = (
        jax.ShapeDtypeStruct((Bp, H), ctx_dtype),   # context
        jax.ShapeDtypeStruct((Bp, S), attn_dtype),  # attention weights
    )

    ctx, attn = pl.pallas_call(
        _spatial_attention_kernel,
        out_shape=out_shapes,
        grid_spec=grid_spec,
        compiler_params=pltpu.CompilerParams(
            dimension_semantics=("parallel",),
            vmem_limit_bytes=vmem_limit,
        ),
    )(queries, keys, values)

    return ctx[:B], attn[:B]


def _reference(queries, keys, values):
    # Pure-JAX reference for correctness checking.
    if queries.ndim == 3:
        queries = queries[:, 0, :]
    H = keys.shape[-1]
    scores = jnp.einsum("bsh,bh->bs", keys, queries) / math.sqrt(H)   # (B, S)
    attn = jax.nn.softmax(scores, axis=1)
    ctx = jnp.einsum("bs,bsh->bh", attn, values)
    return ctx, attn


if __name__ == "__main__":
    # Small test shapes: batch=8, spatial positions=16, hidden_size=128
    # (lane-dense hidden so the HBM-bound kernel wastes no lane padding).
    B, S, H = 8, 16, 128

    key = jax.random.PRNGKey(0)
    kq, kk, kv = jax.random.split(key, 3)
    queries = jax.random.normal(kq, (B, H), dtype=jnp.float32)
    keys = jax.random.normal(kk, (B, S, H), dtype=jnp.float32)
    values = jax.random.normal(kv, (B, S, H), dtype=jnp.float32)

    ctx, attn = spatial_attention(queries, keys, values)
    jax.block_until_ready((ctx, attn))

    ref_ctx, ref_attn = _reference(queries, keys, values)
    # Exact softmax division in the kernel -> tight tolerances (only reduce-order
    # differences vs. the einsum reference remain).
    assert jnp.allclose(ctx, ref_ctx, atol=1e-4, rtol=1e-4)
    assert jnp.allclose(attn, ref_attn, atol=1e-4, rtol=1e-4)
    assert jnp.allclose(jnp.sum(attn, axis=1), 1.0, atol=1e-4)

    print("KERNEL_OK")
</pallas_src>

<mosaic_0001>
module attributes {stable_mosaic.version = 11 : i64} {
  func.func @_spatial_attention_kernel(%arg0: i32, %arg1: memref<8x128xf32, #tpu.memory_space<vmem>>, %arg2: memref<8x16x128xf32, #tpu.memory_space<vmem>>, %arg3: memref<8x16x128xf32, #tpu.memory_space<vmem>>, %arg4: memref<8x128xf32, #tpu.memory_space<vmem>>, %arg5: memref<8x16xf32, #tpu.memory_space<vmem>>) attributes {dimension_semantics = [#tpu.dimension_semantics<parallel>], iteration_bounds = array<i64: 1>, scalar_prefetch = 0 : i64, scratch_operands = 0 : i64, tpu.core_type = #tpu.core_type<tc>, window_params = [{transform_indices = @transform_0, window_bounds = array<i64: 8, 128>}, {transform_indices = @transform_1, window_bounds = array<i64: 8, 16, 128>}, {transform_indices = @transform_2, window_bounds = array<i64: 8, 16, 128>}, {transform_indices = @transform_3, window_bounds = array<i64: 8, 128>}, {transform_indices = @transform_4, window_bounds = array<i64: 8, 16>}]} {
    %c0 = arith.constant 0 : index
    %c0_0 = arith.constant 0 : index
    %0 = vector.load %arg1[%c0, %c0_0] : memref<8x128xf32, #tpu.memory_space<vmem>>, vector<8x128xf32>
    %c0_1 = arith.constant 0 : index
    %c0_2 = arith.constant 0 : index
    %c0_3 = arith.constant 0 : index
    %1 = vector.load %arg2[%c0_1, %c0_2, %c0_3] : memref<8x16x128xf32, #tpu.memory_space<vmem>>, vector<8x16x128xf32>
    %c0_4 = arith.constant 0 : index
    %c0_5 = arith.constant 0 : index
    %c0_6 = arith.constant 0 : index
    %2 = vector.load %arg3[%c0_4, %c0_5, %c0_6] : memref<8x16x128xf32, #tpu.memory_space<vmem>>, vector<8x16x128xf32>
    %3 = vector.shape_cast %0 : vector<8x128xf32> to vector<8x1x128xf32>
    %4 = vector.broadcast %3 : vector<8x1x128xf32> to vector<8x16x128xf32>
    %5 = arith.mulf %1, %4 : vector<8x16x128xf32>
    %cst = arith.constant dense<0.000000e+00> : vector<8x16xf32>
    %6 = vector.multi_reduction <add>, %5, %cst [2] : vector<8x16x128xf32> to vector<8x16xf32>
    %cst_7 = arith.constant 0.0883883461 : f32
    %7 = vector.broadcast %cst_7 : f32 to vector<8x16xf32>
    %8 = arith.mulf %6, %7 : vector<8x16xf32>
    %cst_8 = arith.constant dense<0xFF800000> : vector<8xf32>
    %9 = vector.multi_reduction <maximumf>, %8, %cst_8 [1] : vector<8x16xf32> to vector<8xf32>
    %10 = vector.shape_cast %9 : vector<8xf32> to vector<8x1xf32>
    %11 = vector.broadcast %10 : vector<8x1xf32> to vector<8x16xf32>
    %12 = arith.subf %8, %11 : vector<8x16xf32>
    %13 = math.exp %12 : vector<8x16xf32>
    %cst_9 = arith.constant dense<0.000000e+00> : vector<8xf32>
    %14 = vector.multi_reduction <add>, %13, %cst_9 [1] : vector<8x16xf32> to vector<8xf32>
    %15 = vector.shape_cast %14 : vector<8xf32> to vector<8x1xf32>
    %16 = vector.broadcast %15 : vector<8x1xf32> to vector<8x16xf32>
    %17 = arith.divf %13, %16 : vector<8x16xf32>
    %c0_10 = arith.constant 0 : index
    %c0_11 = arith.constant 0 : index
    %18 = vector.load %arg5[%c0_10, %c0_11] : memref<8x16xf32, #tpu.memory_space<vmem>>, vector<8x16xf32>
    tpu.vector_store %arg5[%c0_10, %c0_11], %17 {strides = array<i32>} : memref<8x16xf32, #tpu.memory_space<vmem>>, vector<8x16xf32>,
    %19 = vector.shape_cast %17 : vector<8x16xf32> to vector<8x16x1xf32>
    %20 = vector.broadcast %19 : vector<8x16x1xf32> to vector<8x16x128xf32>
    %21 = arith.mulf %20, %2 : vector<8x16x128xf32>
    %cst_12 = arith.constant dense<0.000000e+00> : vector<8x128xf32>
    %22 = vector.multi_reduction <add>, %21, %cst_12 [1] : vector<8x16x128xf32> to vector<8x128xf32>
    %c0_13 = arith.constant 0 : index
    %c0_14 = arith.constant 0 : index
    %23 = vector.load %arg4[%c0_13, %c0_14] : memref<8x128xf32, #tpu.memory_space<vmem>>, vector<8x128xf32>
    tpu.vector_store %arg4[%c0_13, %c0_14], %22 {strides = array<i32>} : memref<8x128xf32, #tpu.memory_space<vmem>>, vector<8x128xf32>,
    return
  }
  func.func @transform_0(%arg0: i32) -> (i32, i32) {
    %c0_i32 = arith.constant 0 : i32
    %c0_i32_0 = arith.constant 0 : i32
    return %arg0, %c0_i32 : i32, i32
  }
  func.func @transform_1(%arg0: i32) -> (i32, i32, i32) {
    %c0_i32 = arith.constant 0 : i32
    %c0_i32_0 = arith.constant 0 : i32
    %c0_i32_1 = arith.constant 0 : i32
    return %arg0, %c0_i32, %c0_i32_0 : i32, i32, i32
  }
  func.func @transform_2(%arg0: i32) -> (i32, i32, i32) {
    %c0_i32 = arith.constant 0 : i32
    %c0_i32_0 = arith.constant 0 : i32
    %c0_i32_1 = arith.constant 0 : i32
    return %arg0, %c0_i32, %c0_i32_0 : i32, i32, i32
  }
  func.func @transform_3(%arg0: i32) -> (i32, i32) {
    %c0_i32 = arith.constant 0 : i32
    %c0_i32_0 = arith.constant 0 : i32
    return %arg0, %c0_i32 : i32, i32
  }
  func.func @transform_4(%arg0: i32) -> (i32, i32) {
    %c0_i32 = arith.constant 0 : i32
    %c0_i32_0 = arith.constant 0 : i32
    return %arg0, %c0_i32 : i32, i32
  }
}

</mosaic_0001>

<llo_original>
// kernel: tpu_custom_call.1
$region0: #{tpu_custom_call.1}
  #allocation0 [shape = 'u32[]', space=smem, size = 0x4, offset = 0x4, fixed_abs, tag = 'smem constant byte address 0x4 - core index']
  #allocation1 [shape = 'u32[144,128]{1,0:T(1,128)}', space=vmem, size = 0x12000, scoped, tag = 'internal scratch']
  %s0 = inlined_call_operand.hbm [shape: f32[8,128], index: 0, kind: input, shape index: {}]
  %s1 = inlined_call_operand.hbm [shape: f32[8,16,128], index: 1, kind: input, shape index: {}]
  %s2 = inlined_call_operand.hbm [shape: f32[8,16,128], index: 2, kind: input, shape index: {}]
  %s3 = inlined_call_operand.hbm [shape: f32[8,128], index: 3, kind: output, shape index: {0}]
  %s4 = inlined_call_operand.hbm [shape: f32[8,16], index: 4, kind: output, shape index: {1}]
  %5 = xla_tuple %s3, %s4
  %s6 = sld [smem:[#allocation0]]
  $region42: #{tpu_custom_call.1} parent=0
    _
  %s8 = ssub.s32 1, %s6
  %s9 = scalar_select 0, %s8, %s6
  $region1: #{tpu_custom_call.1} parent=0
    #allocation2 [shape = 'u8[4096]{0}', space=vmem, size = 0x1000, scoped, tag = 'input window, operand 0, single buffered']
    #allocation3 [shape = 's32[1]{0}', space=sflag, size = 0x4, scoped, tag = 'scoped memory for tpu_custom_call.1']
    #allocation4 [shape = 's32[1]{0}', space=sflag, size = 0x4, scoped, tag = 'scoped memory for tpu_custom_call.1']
    #allocation5 [shape = 'u8[65536]{0}', space=vmem, size = 0x10000, scoped, tag = 'input window, operand 1, single buffered']
    #allocation6 [shape = 's32[1]{0}', space=sflag, size = 0x4, scoped, tag = 'scoped memory for tpu_custom_call.1']
    #allocation7 [shape = 'u8[65536]{0}', space=vmem, size = 0x10000, scoped, tag = 'input window, operand 2, single buffered']
    #allocation8 [shape = 'u8[4096]{0}', space=vmem, size = 0x1000, scoped, tag = 'output window, operand 0, single buffered']
    #allocation9 [shape = 'u8[4096]{0}', space=vmem, size = 0x1000, scoped, tag = 'output window, operand 1, single buffered']
    #allocation10 [shape = 's32[1]{0}', space=sflag, size = 0x4, scoped, tag = 'scoped memory for tpu_custom_call.1']
    %10 = vsyncpa [#allocation3], 0
    %11 = vsyncpa [#allocation6], 0
    %12 = vsyncpa [#allocation4], 0
    %13 = vsyncpa [#allocation10], 0
    // Predicated region
    $region2: #{tpu_custom_call.1} parent=1 // pred_check
      _
    $region3: #{tpu_custom_call.1} parent=1 // pred_check_branch
      %15 = sbr.rel (0) target = $region5
    $region4: #{tpu_custom_call.1} parent=1 // pred_region
      %s17 = ssub.s32 128, 128
      %18 = vsyncadd [#allocation3], %s17
      %s20 = sshll.u32 [#allocation2], 4
      %s21 = int_to_ptr.vmem [resolvable:$true] %s20
      %23 = dma.hbm_to_vmem [thread:$0]  %s0, 128, %s21, [#allocation3]
    $region5: #{tpu_custom_call.1} parent=1 // pred_fallthru
      _
    // Predicated region
    $region6: #{tpu_custom_call.1} parent=1 // pred_check
      _
    $region7: #{tpu_custom_call.1} parent=1 // pred_check_branch
      %25 = sbr.rel (0) target = $region9
    $region8: #{tpu_custom_call.1} parent=1 // pred_region
      %s27 = ssub.s32 2048, 2048
      %28 = vsyncadd [#allocation6], %s27
      %s29 = sshll.u32 [#allocation5], 4
      %s30 = int_to_ptr.vmem [resolvable:$true] %s29
      %35 = dma.hbm_to_vmem [thread:$0]  %s1, 2048, %s30, [#allocation6], 128, 128, 8
    $region9: #{tpu_custom_call.1} parent=1 // pred_fallthru
      _
    // Predicated region
    $region10: #{tpu_custom_call.1} parent=1 // pred_check
      _
    $region11: #{tpu_custom_call.1} parent=1 // pred_check_branch
      %37 = sbr.rel (0) target = $region13
    $region12: #{tpu_custom_call.1} parent=1 // pred_region
      %s39 = ssub.s32 2048, 2048
      %40 = vsyncadd [#allocation6], %s39
      %s41 = sshll.u32 [#allocation7], 4
      %s42 = int_to_ptr.vmem [resolvable:$true] %s41
      %47 = dma.hbm_to_vmem [thread:$0]  %s2, 2048, %s42, [#allocation6], 128, 128, 8
    $region13: #{tpu_custom_call.1} parent=1 // pred_fallthru
      _
    // Predicated region
    $region14: #{tpu_custom_call.1} parent=1 // pred_check
      _
    $region15: #{tpu_custom_call.1} parent=1 // pred_check_branch
      %49 = sbr.rel (0) target = $region17
    $region16: #{tpu_custom_call.1} parent=1 // pred_region
      %50 = dma.done [#allocation3], 128
    $region17: #{tpu_custom_call.1} parent=1 // pred_fallthru
      _
    // Predicated region
    $region18: #{tpu_custom_call.1} parent=1 // pred_check
      _
    $region19: #{tpu_custom_call.1} parent=1 // pred_check_branch
      %52 = sbr.rel (0) target = $region21
    $region20: #{tpu_custom_call.1} parent=1 // pred_region
      %53 = dma.done [#allocation6], 2048
    $region21: #{tpu_custom_call.1} parent=1 // pred_fallthru
      _
    // Predicated region
    $region22: #{tpu_custom_call.1} parent=1 // pred_check
      _
    $region23: #{tpu_custom_call.1} parent=1 // pred_check_branch
      %55 = sbr.rel (0) target = $region25
    $region24: #{tpu_custom_call.1} parent=1 // pred_region
      %56 = dma.done [#allocation6], 2048
    $region25: #{tpu_custom_call.1} parent=1 // pred_fallthru
      _
    %v57 = vld [vmem:[#allocation2] sm:$0xff]
    %v58 = vld [vmem:[#allocation5] sm:$0xff]
    %v59 = vld [vmem:[#allocation5 + $0x8] sm:$0xff]
    %v60 = vld [vmem:[#allocation5 + $0x10] sm:$0xff]
    %v61 = vld [vmem:[#allocation5 + $0x18] sm:$0xff]
    %v62 = vld [vmem:[#allocation5 + $0x20] sm:$0xff]
    %v63 = vld [vmem:[#allocation5 + $0x28] sm:$0xff]
    %v64 = vld [vmem:[#allocation5 + $0x30] sm:$0xff]
    %v65 = vld [vmem:[#allocation5 + $0x38] sm:$0xff]
    %v66 = vld [vmem:[#allocation5 + $0x40] sm:$0xff]
    %v67 = vld [vmem:[#allocation5 + $0x48] sm:$0xff]
    %v68 = vld [vmem:[#allocation5 + $0x50] sm:$0xff]
    %v69 = vld [vmem:[#allocation5 + $0x58] sm:$0xff]
    %v70 = vld [vmem:[#allocation5 + $0x60] sm:$0xff]
    %v71 = vld [vmem:[#allocation5 + $0x68] sm:$0xff]
    %v72 = vld [vmem:[#allocation5 + $0x70] sm:$0xff]
    %v73 = vld [vmem:[#allocation5 + $0x78] sm:$0xff]
    %v74 = vld [vmem:[#allocation7] sm:$0xff]
    %v75 = vld [vmem:[#allocation7 + $0x8] sm:$0xff]
    %v76 = vld [vmem:[#allocation7 + $0x10] sm:$0xff]
    %v77 = vld [vmem:[#allocation7 + $0x18] sm:$0xff]
    %v78 = vld [vmem:[#allocation7 + $0x20] sm:$0xff]
    %v79 = vld [vmem:[#allocation7 + $0x28] sm:$0xff]
    %v80 = vld [vmem:[#allocation7 + $0x30] sm:$0xff]
    %v81 = vld [vmem:[#allocation7 + $0x38] sm:$0xff]
    %v82 = vld [vmem:[#allocation7 + $0x40] sm:$0xff]
    %v83 = vld [vmem:[#allocation7 + $0x48] sm:$0xff]
    %v84 = vld [vmem:[#allocation7 + $0x50] sm:$0xff]
    %v85 = vld [vmem:[#allocation7 + $0x58] sm:$0xff]
    %v86 = vld [vmem:[#allocation7 + $0x60] sm:$0xff]
    %v87 = vld [vmem:[#allocation7 + $0x68] sm:$0xff]
    %v88 = vld [vmem:[#allocation7 + $0x70] sm:$0xff]
    %v89 = vld [vmem:[#allocation7 + $0x78] sm:$0xff]
    %v91 = vcombine.high %v57, %v57
    %v93 = vunpack.c.l.s4 1966171168
    %v94 = vunpack.c.0.s8 %v93
    %v95 = vlaneseq
    %v96 = vshrl.u32 %v95, 7
    %v97 = vsub.s32 %v94, %v96
    %v98 = vrot.slane %v57, %v97
    %v100 = vunpack.c.l.s4 1966171168
    %v101 = vunpack.c.0.s8 %v100
    %v102 = vlaneseq
    %v103 = vshrl.u32 %v102, 7
    %v104 = vsub.s32 %v101, %v103
    %v105 = vrot.slane %v91, %v104
    %v106 = vcombine.high %v98, %v98
    %v107 = vcombine.high %v105, %v105
    %v109 = vunpack.c.l.s4 1966171168
    %v110 = vunpack.c.0.s8 %v109
    %v111 = vlaneseq
    %v112 = vshrl.u32 %v111, 7
    %v113 = vsub.s32 %v110, %v112
    %v114 = vrot.slane %v98, %v113
    %v116 = vunpack.c.l.s4 1966171168
    %v117 = vunpack.c.0.s8 %v116
    %v118 = vlaneseq
    %v119 = vshrl.u32 %v118, 7
    %v120 = vsub.s32 %v117, %v119
    %v121 = vrot.slane %v105, %v120
    %v123 = vunpack.c.l.s4 1966171168
    %v124 = vunpack.c.0.s8 %v123
    %v125 = vlaneseq
    %v126 = vshrl.u32 %v125, 7
    %v127 = vsub.s32 %v124, %v126
    %v128 = vrot.slane %v106, %v127
    %v130 = vunpack.c.l.s4 1966171168
    %v131 = vunpack.c.0.s8 %v130
    %v132 = vlaneseq
    %v133 = vshrl.u32 %v132, 7
    %v134 = vsub.s32 %v131, %v133
    %v135 = vrot.slane %v107, %v134
    %v136 = vcombine.high %v114, %v114
    %v137 = vcombine.high %v121, %v121
    %v138 = vcombine.high %v128, %v128
    %v139 = vcombine.high %v135, %v135
    %v140 = vlaneseq
    %v141 = vshrl.u32 %v140, 7
    %v142 = vsub.s32 0, %v141
    %v143 = vrot.slane %v114, %v142
    %v144 = vlaneseq
    %v145 = vshrl.u32 %v144, 7
    %v146 = vsub.s32 0, %v145
    %v147 = vrot.slane %v128, %v146
    %v148 = vlaneseq
    %v149 = vshrl.u32 %v148, 7
    %v150 = vsub.s32 0, %v149
    %v151 = vrot.slane %v136, %v150
    %v152 = vlaneseq
    %v153 = vshrl.u32 %v152, 7
    %v154 = vsub.s32 0, %v153
    %v155 = vrot.slane %v138, %v154
    %v156 = vlaneseq
    %v157 = vshrl.u32 %v156, 7
    %v158 = vsub.s32 0, %v157
    %v159 = vrot.slane %v121, %v158
    %v160 = vlaneseq
    %v161 = vshrl.u32 %v160, 7
    %v162 = vsub.s32 0, %v161
    %v163 = vrot.slane %v135, %v162
    %v164 = vlaneseq
    %v165 = vshrl.u32 %v164, 7
    %v166 = vsub.s32 0, %v165
    %v167 = vrot.slane %v137, %v166
    %v168 = vlaneseq
    %v169 = vshrl.u32 %v168, 7
    %v170 = vsub.s32 0, %v169
    %v171 = vrot.slane %v139, %v170
    %v180 = vmul.f32 %v58, %v143
    %v181 = vmul.f32 %v59, %v143
    %v182 = vmul.f32 %v60, %v147
    %v183 = vmul.f32 %v61, %v147
    %v184 = vmul.f32 %v62, %v151
    %v185 = vmul.f32 %v63, %v151
    %v186 = vmul.f32 %v64, %v155
    %v187 = vmul.f32 %v65, %v155
    %v188 = vmul.f32 %v66, %v159
    %v189 = vmul.f32 %v67, %v159
    %v190 = vmul.f32 %v68, %v163
    %v191 = vmul.f32 %v69, %v163
    %v192 = vmul.f32 %v70, %v167
    %v193 = vmul.f32 %v71, %v167
    %v194 = vmul.f32 %v72, %v171
    %v195 = vmul.f32 %v73, %v171
    %196 = vadd.xlane.f32.xlu0 %v180
    %v197 = vpop.xlane.xlu0 %196
    %198 = vadd.xlane.f32.xlu0 %v181
    %v199 = vpop.xlane.xlu0 %198
    %200 = vadd.xlane.f32.xlu0 %v182
    %v201 = vpop.xlane.xlu0 %200
    %202 = vadd.xlane.f32.xlu0 %v183
    %v203 = vpop.xlane.xlu0 %202
    %204 = vadd.xlane.f32.xlu0 %v184
    %v205 = vpop.xlane.xlu0 %204
    %206 = vadd.xlane.f32.xlu0 %v185
    %v207 = vpop.xlane.xlu0 %206
    %208 = vadd.xlane.f32.xlu0 %v186
    %v209 = vpop.xlane.xlu0 %208
    %210 = vadd.xlane.f32.xlu0 %v187
    %v211 = vpop.xlane.xlu0 %210
    %212 = vadd.xlane.f32.xlu0 %v188
    %v213 = vpop.xlane.xlu0 %212
    %214 = vadd.xlane.f32.xlu0 %v189
    %v215 = vpop.xlane.xlu0 %214
    %216 = vadd.xlane.f32.xlu0 %v190
    %v217 = vpop.xlane.xlu0 %216
    %218 = vadd.xlane.f32.xlu0 %v191
    %v219 = vpop.xlane.xlu0 %218
    %220 = vadd.xlane.f32.xlu0 %v192
    %v221 = vpop.xlane.xlu0 %220
    %222 = vadd.xlane.f32.xlu0 %v193
    %v223 = vpop.xlane.xlu0 %222
    %224 = vadd.xlane.f32.xlu0 %v194
    %v225 = vpop.xlane.xlu0 %224
    %226 = vadd.xlane.f32.xlu0 %v195
    %v227 = vpop.xlane.xlu0 %226
    %v228 = vmul.f32 %v197, 0.088388346
    %v229 = vmul.f32 %v199, 0.088388346
    %v230 = vmul.f32 %v201, 0.088388346
    %v231 = vmul.f32 %v203, 0.088388346
    %v232 = vmul.f32 %v205, 0.088388346
    %v233 = vmul.f32 %v207, 0.088388346
    %v234 = vmul.f32 %v209, 0.088388346
    %v235 = vmul.f32 %v211, 0.088388346
    %v236 = vmul.f32 %v213, 0.088388346
    %v237 = vmul.f32 %v215, 0.088388346
    %v238 = vmul.f32 %v217, 0.088388346
    %v239 = vmul.f32 %v219, 0.088388346
    %v240 = vmul.f32 %v221, 0.088388346
    %v241 = vmul.f32 %v223, 0.088388346
    %v242 = vmul.f32 %v225, 0.088388346
    %v243 = vmul.f32 %v227, 0.088388346
    %v260 = vlaneseq
    %v261 = vand.u32 %v260, 127
    %v262 = vlaneseq
    %v263 = vshrl.u32 %v262, 7
    %v264 = vsub.s32 %v261, %v263
    %v265 = vrot.slane %v228, %v264
    %v266 = vadd.s32 %v261, 4294967288
    %v267 = vlaneseq
    %v268 = vshrl.u32 %v267, 7
    %v269 = vsub.s32 %v266, %v268
    %v270 = vrot.slane %v229, %v269
    %vm271 = vcmask 130112
    %v272 = vsel %vm271, %v270, %v265
    %v273 = vlaneseq
    %v274 = vshrl.u32 %v273, 7
    %v275 = vsub.s32 %v261, %v274
    %v276 = vrot.slane %v230, %v275
    %v277 = vlaneseq
    %v278 = vshrl.u32 %v277, 7
    %v279 = vsub.s32 %v266, %v278
    %v280 = vrot.slane %v231, %v279
    %v281 = vsel %vm271, %v280, %v276
    %v282 = vlaneseq
    %v283 = vshrl.u32 %v282, 7
    %v284 = vsub.s32 %v261, %v283
    %v285 = vrot.slane %v232, %v284
    %v286 = vlaneseq
    %v287 = vshrl.u32 %v286, 7
    %v288 = vsub.s32 %v266, %v287
    %v289 = vrot.slane %v233, %v288
    %v290 = vsel %vm271, %v289, %v285
    %v291 = vlaneseq
    %v292 = vshrl.u32 %v291, 7
    %v293 = vsub.s32 %v261, %v292
    %v294 = vrot.slane %v234, %v293
    %v295 = vlaneseq
    %v296 = vshrl.u32 %v295, 7
    %v297 = vsub.s32 %v266, %v296
    %v298 = vrot.slane %v235, %v297
    %v299 = vsel %vm271, %v298, %v294
    %v300 = vlaneseq
    %v301 = vshrl.u32 %v300, 7
    %v302 = vsub.s32 %v261, %v301
    %v303 = vrot.slane %v236, %v302
    %v304 = vlaneseq
    %v305 = vshrl.u32 %v304, 7
    %v306 = vsub.s32 %v266, %v305
    %v307 = vrot.slane %v237, %v306
    %v308 = vsel %vm271, %v307, %v303
    %v309 = vlaneseq
    %v310 = vshrl.u32 %v309, 7
    %v311 = vsub.s32 %v261, %v310
    %v312 = vrot.slane %v238, %v311
    %v313 = vlaneseq
    %v314 = vshrl.u32 %v313, 7
    %v315 = vsub.s32 %v266, %v314
    %v316 = vrot.slane %v239, %v315
    %v317 = vsel %vm271, %v316, %v312
    %v318 = vlaneseq
    %v319 = vshrl.u32 %v318, 7
    %v320 = vsub.s32 %v261, %v319
    %v321 = vrot.slane %v240, %v320
    %v322 = vlaneseq
    %v323 = vshrl.u32 %v322, 7
    %v324 = vsub.s32 %v266, %v323
    %v325 = vrot.slane %v241, %v324
    %v326 = vsel %vm271, %v325, %v321
    %v327 = vlaneseq
    %v328 = vshrl.u32 %v327, 7
    %v329 = vsub.s32 %v261, %v328
    %v330 = vrot.slane %v242, %v329
    %v331 = vlaneseq
    %v332 = vshrl.u32 %v331, 7
    %v333 = vsub.s32 %v266, %v332
    %v334 = vrot.slane %v243, %v333
    %v335 = vsel %vm271, %v334, %v330
    %vm336 = vcmask 1041409
    %v337 = vsel %vm336, %v281, %v272
    %vm338 = vcmask 1042434
    %v339 = vsel %vm338, %v290, %v337
    %vm340 = vcmask 1043459
    %v341 = vsel %vm340, %v299, %v339
    %vm342 = vcmask 1044484
    %v343 = vsel %vm342, %v308, %v341
    %vm344 = vcmask 1045509
    %v345 = vsel %vm344, %v317, %v343
    %vm346 = vcmask 1046534
    %v347 = vsel %vm346, %v326, %v345
    %vm348 = vcmask 1047559
    %v349 = vsel %vm348, %v335, %v347
    %vm351 = vcmask 130048
    %v352 = vsel %vm351, %v349, -inf
    %353 = vmax.xlane.f32.xlu0 %v352
    %v354 = vpop.xlane.xlu0 %353
    %v356 = vlaneseq
    %v357 = vshrl.u32 %v356, 7
    %v358 = vsub.s32 0, %v357
    %v359 = vrot.slane %v354, %v358
    %v360 = vlaneseq
    %v361 = vshrl.u32 %v360, 7
    %v362 = vsub.s32 1, %v361
    %v363 = vrot.slane %v354, %v362
    %v364 = vlaneseq
    %v365 = vshrl.u32 %v364, 7
    %v366 = vsub.s32 2, %v365
    %v367 = vrot.slane %v354, %v366
    %v368 = vlaneseq
    %v369 = vshrl.u32 %v368, 7
    %v370 = vsub.s32 3, %v369
    %v371 = vrot.slane %v354, %v370
    %v372 = vlaneseq
    %v373 = vshrl.u32 %v372, 7
    %v374 = vsub.s32 4, %v373
    %v375 = vrot.slane %v354, %v374
    %v376 = vlaneseq
    %v377 = vshrl.u32 %v376, 7
    %v378 = vsub.s32 5, %v377
    %v379 = vrot.slane %v354, %v378
    %v380 = vlaneseq
    %v381 = vshrl.u32 %v380, 7
    %v382 = vsub.s32 6, %v381
    %v383 = vrot.slane %v354, %v382
    %v384 = vlaneseq
    %v385 = vshrl.u32 %v384, 7
    %v386 = vsub.s32 7, %v385
    %v387 = vrot.slane %v354, %v386
    %v396 = vsub.f32 %v228, %v359
    %v397 = vsub.f32 %v229, %v359
    %v398 = vsub.f32 %v230, %v363
    %v399 = vsub.f32 %v231, %v363
    %v400 = vsub.f32 %v232, %v367
    %v401 = vsub.f32 %v233, %v367
    %v402 = vsub.f32 %v234, %v371
    %v403 = vsub.f32 %v235, %v371
    %v404 = vsub.f32 %v236, %v375
    %v405 = vsub.f32 %v237, %v375
    %v406 = vsub.f32 %v238, %v379
    %v407 = vsub.f32 %v239, %v379
    %v408 = vsub.f32 %v240, %v383
    %v409 = vsub.f32 %v241, %v383
    %v410 = vsub.f32 %v242, %v387
    %v411 = vsub.f32 %v243, %v387
    %v412 = vmul.f32 %v396, 1.442695
    %v413 = vpow.pop %v412
    %v414 = vmul.f32 %v397, 1.442695
    %v415 = vpow.pop %v414
    %v416 = vmul.f32 %v398, 1.442695
    %v417 = vpow.pop %v416
    %v418 = vmul.f32 %v399, 1.442695
    %v419 = vpow.pop %v418
    %v420 = vmul.f32 %v400, 1.442695
    %v421 = vpow.pop %v420
    %v422 = vmul.f32 %v401, 1.442695
    %v423 = vpow.pop %v422
    %v424 = vmul.f32 %v402, 1.442695
    %v425 = vpow.pop %v424
    %v426 = vmul.f32 %v403, 1.442695
    %v427 = vpow.pop %v426
    %v428 = vmul.f32 %v404, 1.442695
    %v429 = vpow.pop %v428
    %v430 = vmul.f32 %v405, 1.442695
    %v431 = vpow.pop %v430
    %v432 = vmul.f32 %v406, 1.442695
    %v433 = vpow.pop %v432
    %v434 = vmul.f32 %v407, 1.442695
    %v435 = vpow.pop %v434
    %v436 = vmul.f32 %v408, 1.442695
    %v437 = vpow.pop %v436
    %v438 = vmul.f32 %v409, 1.442695
    %v439 = vpow.pop %v438
    %v440 = vmul.f32 %v410, 1.442695
    %v441 = vpow.pop %v440
    %v442 = vmul.f32 %v411, 1.442695
    %v443 = vpow.pop %v442
    %460 = vset.pattern.permute.xlu0 0
    %461 = vperm.xlu0 %460, %v413
    %v462 = vpop.permute.xlu0 %461
    %463 = vset.pattern.permute.xlu0 0
    %464 = vperm.xlu0 %463, %v415
    %v465 = vpop.permute.xlu0 %464
    %466 = vset.pattern.permute.xlu0 0
    %467 = vperm.xlu0 %466, %v417
    %v468 = vpop.permute.xlu0 %467
    %469 = vset.pattern.permute.xlu0 0
    %470 = vperm.xlu0 %469, %v419
    %v471 = vpop.permute.xlu0 %470
    %472 = vset.pattern.permute.xlu0 0
    %473 = vperm.xlu0 %472, %v421
    %v474 = vpop.permute.xlu0 %473
    %475 = vset.pattern.permute.xlu0 0
    %476 = vperm.xlu0 %475, %v423
    %v477 = vpop.permute.xlu0 %476
    %478 = vset.pattern.permute.xlu0 0
    %479 = vperm.xlu0 %478, %v425
    %v480 = vpop.permute.xlu0 %479
    %481 = vset.pattern.permute.xlu0 0
    %482 = vperm.xlu0 %481, %v427
    %v483 = vpop.permute.xlu0 %482
    %484 = vset.pattern.permute.xlu0 0
    %485 = vperm.xlu0 %484, %v429
    %v486 = vpop.permute.xlu0 %485
    %487 = vset.pattern.permute.xlu0 0
    %488 = vperm.xlu0 %487, %v431
    %v489 = vpop.permute.xlu0 %488
    %490 = vset.pattern.permute.xlu0 0
    %491 = vperm.xlu0 %490, %v433
    %v492 = vpop.permute.xlu0 %491
    %493 = vset.pattern.permute.xlu0 0
    %494 = vperm.xlu0 %493, %v435
    %v495 = vpop.permute.xlu0 %494
    %496 = vset.pattern.permute.xlu0 0
    %497 = vperm.xlu0 %496, %v437
    %v498 = vpop.permute.xlu0 %497
    %499 = vset.pattern.permute.xlu0 0
    %500 = vperm.xlu0 %499, %v439
    %v501 = vpop.permute.xlu0 %500
    %502 = vset.pattern.permute.xlu0 0
    %503 = vperm.xlu0 %502, %v441
    %v504 = vpop.permute.xlu0 %503
    %505 = vset.pattern.permute.xlu0 0
    %506 = vperm.xlu0 %505, %v443
    %v507 = vpop.permute.xlu0 %506
    %v508 = vlaneseq
    %v509 = vshrl.u32 %v508, 7
    %v510 = vsub.s32 %v261, %v509
    %v511 = vrot.slane %v462, %v510
    %v512 = vlaneseq
    %v513 = vshrl.u32 %v512, 7
    %v514 = vsub.s32 %v266, %v513
    %v515 = vrot.slane %v465, %v514
    %v516 = vsel %vm271, %v515, %v511
    %v517 = vlaneseq
    %v518 = vshrl.u32 %v517, 7
    %v519 = vsub.s32 %v261, %v518
    %v520 = vrot.slane %v468, %v519
    %v521 = vlaneseq
    %v522 = vshrl.u32 %v521, 7
    %v523 = vsub.s32 %v266, %v522
    %v524 = vrot.slane %v471, %v523
    %v525 = vsel %vm271, %v524, %v520
    %v526 = vlaneseq
    %v527 = vshrl.u32 %v526, 7
    %v528 = vsub.s32 %v261, %v527
    %v529 = vrot.slane %v474, %v528
    %v530 = vlaneseq
    %v531 = vshrl.u32 %v530, 7
    %v532 = vsub.s32 %v266, %v531
    %v533 = vrot.slane %v477, %v532
    %v534 = vsel %vm271, %v533, %v529
    %v535 = vlaneseq
    %v536 = vshrl.u32 %v535, 7
    %v537 = vsub.s32 %v261, %v536
    %v538 = vrot.slane %v480, %v537
    %v539 = vlaneseq
    %v540 = vshrl.u32 %v539, 7
    %v541 = vsub.s32 %v266, %v540
    %v542 = vrot.slane %v483, %v541
    %v543 = vsel %vm271, %v542, %v538
    %v544 = vlaneseq
    %v545 = vshrl.u32 %v544, 7
    %v546 = vsub.s32 %v261, %v545
    %v547 = vrot.slane %v486, %v546
    %v548 = vlaneseq
    %v549 = vshrl.u32 %v548, 7
    %v550 = vsub.s32 %v266, %v549
    %v551 = vrot.slane %v489, %v550
    %v552 = vsel %vm271, %v551, %v547
    %v553 = vlaneseq
    %v554 = vshrl.u32 %v553, 7
    %v555 = vsub.s32 %v261, %v554
    %v556 = vrot.slane %v492, %v555
    %v557 = vlaneseq
    %v558 = vshrl.u32 %v557, 7
    %v559 = vsub.s32 %v266, %v558
    %v560 = vrot.slane %v495, %v559
    %v561 = vsel %vm271, %v560, %v556
    %v562 = vlaneseq
    %v563 = vshrl.u32 %v562, 7
    %v564 = vsub.s32 %v261, %v563
    %v565 = vrot.slane %v498, %v564
    %v566 = vlaneseq
    %v567 = vshrl.u32 %v566, 7
    %v568 = vsub.s32 %v266, %v567
    %v569 = vrot.slane %v501, %v568
    %v570 = vsel %vm271, %v569, %v565
    %v571 = vlaneseq
    %v572 = vshrl.u32 %v571, 7
    %v573 = vsub.s32 %v261, %v572
    %v574 = vrot.slane %v504, %v573
    %v575 = vlaneseq
    %v576 = vshrl.u32 %v575, 7
    %v577 = vsub.s32 %v266, %v576
    %v578 = vrot.slane %v507, %v577
    %v579 = vsel %vm271, %v578, %v574
    %v580 = vsel %vm336, %v525, %v516
    %v581 = vsel %vm338, %v534, %v580
    %v582 = vsel %vm340, %v543, %v581
    %v583 = vsel %vm342, %v552, %v582
    %v584 = vsel %vm344, %v561, %v583
    %v585 = vsel %vm346, %v570, %v584
    %v586 = vsel %vm348, %v579, %v585
    %v588 = vsel %vm351, %v586, 0.0
    %589 = vadd.xlane.f32.xlu0 %v588
    %v590 = vpop.xlane.xlu0 %589
    %v592 = vlaneseq
    %v593 = vshrl.u32 %v592, 7
    %v594 = vsub.s32 0, %v593
    %v595 = vrot.slane %v590, %v594
    %v596 = vlaneseq
    %v597 = vshrl.u32 %v596, 7
    %v598 = vsub.s32 1, %v597
    %v599 = vrot.slane %v590, %v598
    %v600 = vlaneseq
    %v601 = vshrl.u32 %v600, 7
    %v602 = vsub.s32 2, %v601
    %v603 = vrot.slane %v590, %v602
    %v604 = vlaneseq
    %v605 = vshrl.u32 %v604, 7
    %v606 = vsub.s32 3, %v605
    %v607 = vrot.slane %v590, %v606
    %v608 = vlaneseq
    %v609 = vshrl.u32 %v608, 7
    %v610 = vsub.s32 4, %v609
    %v611 = vrot.slane %v590, %v610
    %v612 = vlaneseq
    %v613 = vshrl.u32 %v612, 7
    %v614 = vsub.s32 5, %v613
    %v615 = vrot.slane %v590, %v614
    %v616 = vlaneseq
    %v617 = vshrl.u32 %v616, 7
    %v618 = vsub.s32 6, %v617
    %v619 = vrot.slane %v590, %v618
    %v620 = vlaneseq
    %v621 = vshrl.u32 %v620, 7
    %v622 = vsub.s32 7, %v621
    %v623 = vrot.slane %v590, %v622
    %v632 = vrcp.pop %v595
    %v633 = vmul.f32 %v413, %v632
    %v634 = vmul.f32 %v415, %v632
    %v635 = vrcp.pop %v599
    %v636 = vmul.f32 %v417, %v635
    %v637 = vmul.f32 %v419, %v635
    %v638 = vrcp.pop %v603
    %v639 = vmul.f32 %v421, %v638
    %v640 = vmul.f32 %v423, %v638
    %v641 = vrcp.pop %v607
    %v642 = vmul.f32 %v425, %v641
    %v643 = vmul.f32 %v427, %v641
    %v644 = vrcp.pop %v611
    %v645 = vmul.f32 %v429, %v644
    %v646 = vmul.f32 %v431, %v644
    %v647 = vrcp.pop %v615
    %v648 = vmul.f32 %v433, %v647
    %v649 = vmul.f32 %v435, %v647
    %v650 = vrcp.pop %v619
    %v651 = vmul.f32 %v437, %v650
    %v652 = vmul.f32 %v439, %v650
    %v653 = vrcp.pop %v623
    %v654 = vmul.f32 %v441, %v653
    %v655 = vmul.f32 %v443, %v653
    %672 = vset.pattern.permute.xlu0 0
    %673 = vperm.xlu0 %672, %v633
    %v674 = vpop.permute.xlu0 %673
    %675 = vset.pattern.permute.xlu0 0
    %676 = vperm.xlu0 %675, %v634
    %v677 = vpop.permute.xlu0 %676
    %678 = vset.pattern.permute.xlu0 0
    %679 = vperm.xlu0 %678, %v636
    %v680 = vpop.permute.xlu0 %679
    %681 = vset.pattern.permute.xlu0 0
    %682 = vperm.xlu0 %681, %v637
    %v683 = vpop.permute.xlu0 %682
    %684 = vset.pattern.permute.xlu0 0
    %685 = vperm.xlu0 %684, %v639
    %v686 = vpop.permute.xlu0 %685
    %687 = vset.pattern.permute.xlu0 0
    %688 = vperm.xlu0 %687, %v640
    %v689 = vpop.permute.xlu0 %688
    %690 = vset.pattern.permute.xlu0 0
    %691 = vperm.xlu0 %690, %v642
    %v692 = vpop.permute.xlu0 %691
    %693 = vset.pattern.permute.xlu0 0
    %694 = vperm.xlu0 %693, %v643
    %v695 = vpop.permute.xlu0 %694
    %696 = vset.pattern.permute.xlu0 0
    %697 = vperm.xlu0 %696, %v645
    %v698 = vpop.permute.xlu0 %697
    %699 = vset.pattern.permute.xlu0 0
    %700 = vperm.xlu0 %699, %v646
    %v701 = vpop.permute.xlu0 %700
    %702 = vset.pattern.permute.xlu0 0
    %703 = vperm.xlu0 %702, %v648
    %v704 = vpop.permute.xlu0 %703
    %705 = vset.pattern.permute.xlu0 0
    %706 = vperm.xlu0 %705, %v649
    %v707 = vpop.permute.xlu0 %706
    %708 = vset.pattern.permute.xlu0 0
    %709 = vperm.xlu0 %708, %v651
    %v710 = vpop.permute.xlu0 %709
    %711 = vset.pattern.permute.xlu0 0
    %712 = vperm.xlu0 %711, %v652
    %v713 = vpop.permute.xlu0 %712
    %714 = vset.pattern.permute.xlu0 0
    %715 = vperm.xlu0 %714, %v654
    %v716 = vpop.permute.xlu0 %715
    %717 = vset.pattern.permute.xlu0 0
    %718 = vperm.xlu0 %717, %v655
    %v719 = vpop.permute.xlu0 %718
    %v720 = vlaneseq
    %v721 = vshrl.u32 %v720, 7
    %v722 = vsub.s32 %v261, %v721
    %v723 = vrot.slane %v674, %v722
    %v724 = vlaneseq
    %v725 = vshrl.u32 %v724, 7
    %v726 = vsub.s32 %v266, %v725
    %v727 = vrot.slane %v677, %v726
    %v728 = vsel %vm271, %v727, %v723
    %v729 = vlaneseq
    %v730 = vshrl.u32 %v729, 7
    %v731 = vsub.s32 %v261, %v730
    %v732 = vrot.slane %v680, %v731
    %v733 = vlaneseq
    %v734 = vshrl.u32 %v733, 7
    %v735 = vsub.s32 %v266, %v734
    %v736 = vrot.slane %v683, %v735
    %v737 = vsel %vm271, %v736, %v732
    %v738 = vlaneseq
    %v739 = vshrl.u32 %v738, 7
    %v740 = vsub.s32 %v261, %v739
    %v741 = vrot.slane %v686, %v740
    %v742 = vlaneseq
    %v743 = vshrl.u32 %v742, 7
    %v744 = vsub.s32 %v266, %v743
    %v745 = vrot.slane %v689, %v744
    %v746 = vsel %vm271, %v745, %v741
    %v747 = vlaneseq
    %v748 = vshrl.u32 %v747, 7
    %v749 = vsub.s32 %v261, %v748
    %v750 = vrot.slane %v692, %v749
    %v751 = vlaneseq
    %v752 = vshrl.u32 %v751, 7
    %v753 = vsub.s32 %v266, %v752
    %v754 = vrot.slane %v695, %v753
    %v755 = vsel %vm271, %v754, %v750
    %v756 = vlaneseq
    %v757 = vshrl.u32 %v756, 7
    %v758 = vsub.s32 %v261, %v757
    %v759 = vrot.slane %v698, %v758
    %v760 = vlaneseq
    %v761 = vshrl.u32 %v760, 7
    %v762 = vsub.s32 %v266, %v761
    %v763 = vrot.slane %v701, %v762
    %v764 = vsel %vm271, %v763, %v759
    %v765 = vlaneseq
    %v766 = vshrl.u32 %v765, 7
    %v767 = vsub.s32 %v261, %v766
    %v768 = vrot.slane %v704, %v767
    %v769 = vlaneseq
    %v770 = vshrl.u32 %v769, 7
    %v771 = vsub.s32 %v266, %v770
    %v772 = vrot.slane %v707, %v771
    %v773 = vsel %vm271, %v772, %v768
    %v774 = vlaneseq
    %v775 = vshrl.u32 %v774, 7
    %v776 = vsub.s32 %v261, %v775
    %v777 = vrot.slane %v710, %v776
    %v778 = vlaneseq
    %v779 = vshrl.u32 %v778, 7
    %v780 = vsub.s32 %v266, %v779
    %v781 = vrot.slane %v713, %v780
    %v782 = vsel %vm271, %v781, %v777
    %v783 = vlaneseq
    %v784 = vshrl.u32 %v783, 7
    %v785 = vsub.s32 %v261, %v784
    %v786 = vrot.slane %v716, %v785
    %v787 = vlaneseq
    %v788 = vshrl.u32 %v787, 7
    %v789 = vsub.s32 %v266, %v788
    %v790 = vrot.slane %v719, %v789
    %v791 = vsel %vm271, %v790, %v786
    %v792 = vsel %vm336, %v737, %v728
    %v793 = vsel %vm338, %v746, %v792
    %v794 = vsel %vm340, %v755, %v793
    %v795 = vsel %vm342, %v764, %v794
    %v796 = vsel %vm344, %v773, %v795
    %v797 = vsel %vm346, %v782, %v796
    %v798 = vsel %vm348, %v791, %v797
    %800 = vst.msk [vmem:[#allocation9] sm:$0xff] %vm351, %v798
    %v817 = vmul.f32 %v674, %v74
    %v818 = vmul.f32 %v677, %v75
    %v819 = vmul.f32 %v680, %v76
    %v820 = vmul.f32 %v683, %v77
    %v821 = vmul.f32 %v686, %v78
    %v822 = vmul.f32 %v689, %v79
    %v823 = vmul.f32 %v692, %v80
    %v824 = vmul.f32 %v695, %v81
    %v825 = vmul.f32 %v698, %v82
    %v826 = vmul.f32 %v701, %v83
    %v827 = vmul.f32 %v704, %v84
    %v828 = vmul.f32 %v707, %v85
    %v829 = vmul.f32 %v710, %v86
    %v830 = vmul.f32 %v713, %v87
    %v831 = vmul.f32 %v716, %v88
    %v832 = vmul.f32 %v719, %v89
    %v833 = vadd.f32 %v817, %v818
    %v834 = vrot.slane %v833, 4
    %v835 = vadd.f32 %v833, %v834
    %v836 = vrot.slane %v835, 2
    %v837 = vadd.f32 %v835, %v836
    %v838 = vrot.slane %v837, 1
    %v839 = vadd.f32 %v837, %v838
    %v840 = vadd.f32 %v819, %v820
    %v841 = vrot.slane %v840, 4
    %v842 = vadd.f32 %v840, %v841
    %v843 = vrot.slane %v842, 2
    %v844 = vadd.f32 %v842, %v843
    %v845 = vrot.slane %v844, 1
    %v846 = vadd.f32 %v844, %v845
    %v847 = vadd.f32 %v821, %v822
    %v848 = vrot.slane %v847, 4
    %v849 = vadd.f32 %v847, %v848
    %v850 = vrot.slane %v849, 2
    %v851 = vadd.f32 %v849, %v850
    %v852 = vrot.slane %v851, 1
    %v853 = vadd.f32 %v851, %v852
    %v854 = vadd.f32 %v823, %v824
    %v855 = vrot.slane %v854, 4
    %v856 = vadd.f32 %v854, %v855
    %v857 = vrot.slane %v856, 2
    %v858 = vadd.f32 %v856, %v857
    %v859 = vrot.slane %v858, 1
    %v860 = vadd.f32 %v858, %v859
    %v861 = vadd.f32 %v825, %v826
    %v862 = vrot.slane %v861, 4
    %v863 = vadd.f32 %v861, %v862
    %v864 = vrot.slane %v863, 2
    %v865 = vadd.f32 %v863, %v864
    %v866 = vrot.slane %v865, 1
    %v867 = vadd.f32 %v865, %v866
    %v868 = vadd.f32 %v827, %v828
    %v869 = vrot.slane %v868, 4
    %v870 = vadd.f32 %v868, %v869
    %v871 = vrot.slane %v870, 2
    %v872 = vadd.f32 %v870, %v871
    %v873 = vrot.slane %v872, 1
    %v874 = vadd.f32 %v872, %v873
    %v875 = vadd.f32 %v829, %v830
    %v876 = vrot.slane %v875, 4
    %v877 = vadd.f32 %v875, %v876
    %v878 = vrot.slane %v877, 2
    %v879 = vadd.f32 %v877, %v878
    %v880 = vrot.slane %v879, 1
    %v881 = vadd.f32 %v879, %v880
    %v882 = vadd.f32 %v831, %v832
    %v883 = vrot.slane %v882, 4
    %v884 = vadd.f32 %v882, %v883
    %v885 = vrot.slane %v884, 2
    %v886 = vadd.f32 %v884, %v885
    %v887 = vrot.slane %v886, 1
    %v888 = vadd.f32 %v886, %v887
    %v897 = vsel %vm336, %v846, %v839
    %v898 = vsel %vm338, %v853, %v897
    %v899 = vsel %vm340, %v860, %v898
    %v900 = vsel %vm342, %v867, %v899
    %v901 = vsel %vm344, %v874, %v900
    %v902 = vsel %vm346, %v881, %v901
    %v903 = vsel %vm348, %v888, %v902
    %905 = vst [vmem:[#allocation8] sm:$0xff] %v903
    // Predicated region
    $region26: #{tpu_custom_call.1} parent=1 // pred_check
      _
    $region27: #{tpu_custom_call.1} parent=1 // pred_check_branch
      %907 = sbr.rel (0) target = $region29
    $region28: #{tpu_custom_call.1} parent=1 // pred_region
      %s909 = ssub.s32 128, 128
      %910 = vsyncadd [#allocation4], %s909
      %s912 = sshll.u32 [#allocation8], 4
      %s913 = int_to_ptr.vmem [resolvable:$true] %s912
      %915 = dma.vmem_to_hbm [thread:$0]  %s913, 128, %s3, [#allocation4]
    $region29: #{tpu_custom_call.1} parent=1 // pred_fallthru
      _
    // Predicated region
    $region30: #{tpu_custom_call.1} parent=1 // pred_check
      _
    $region31: #{tpu_custom_call.1} parent=1 // pred_check_branch
      %917 = sbr.rel (0) target = $region33
    $region32: #{tpu_custom_call.1} parent=1 // pred_region
      %s919 = ssub.s32 128, 128
      %920 = vsyncadd [#allocation10], %s919
      %s922 = sshll.u32 [#allocation9], 4
      %s923 = int_to_ptr.vmem [resolvable:$true] %s922
      %925 = dma.vmem_to_hbm [thread:$0]  %s923, 128, %s4, [#allocation10]
    $region33: #{tpu_custom_call.1} parent=1 // pred_fallthru
      _
    // Predicated region
    $region34: #{tpu_custom_call.1} parent=1 // pred_check
      _
    $region35: #{tpu_custom_call.1} parent=1 // pred_check_branch
      %927 = sbr.rel (0) target = $region37
    $region36: #{tpu_custom_call.1} parent=1 // pred_region
      %928 = dma.done [#allocation4], 128
    $region37: #{tpu_custom_call.1} parent=1 // pred_fallthru
      _
    // Predicated region
    $region38: #{tpu_custom_call.1} parent=1 // pred_check
      _
    $region39: #{tpu_custom_call.1} parent=1 // pred_check_branch
      %930 = sbr.rel (0) target = $region41
    $region40: #{tpu_custom_call.1} parent=1 // pred_region
      %931 = dma.done [#allocation10], 128
    $region41: #{tpu_custom_call.1} parent=1 // pred_fallthru
      _
    %932 = vsyncpa [#allocation3], 1
    %933 = vsyncpa [#allocation6], 1
    %934 = vsyncpa [#allocation4], 1
    %935 = vsyncpa [#allocation10], 1

</llo_original>
